<compile_context>
chip_gen: v6e
topology: v6e:2x2x1
jax: 0.10.0
libtpu: 0.0.40
codegen_flags: <defaults>
</compile_context>

<pallas_src>
import functools
import math

import jax
import jax.numpy as jnp
from jax import lax
from jax.experimental import pallas as pl
from jax.experimental.pallas import tpu as pltpu


def _fcn_kernel(*refs, num_layers, bn_eps):
    """refs = (x_ref, w1_ref, bn1_ref, w2_ref, bn2_ref, ..., wL_ref, bnL_ref, out_ref).

    x_ref:  (TM, D0)      row tile of the batch
    wi_ref: (Dout, Din)   PyTorch Linear weight layout (out, in), bias=False
    bni_ref:(4, Dout)     rows = [gamma, beta, running_mean, running_var]
    out_ref:(TM, D_last)
    """
    x_ref = refs[0]
    out_ref = refs[-1]
    layer_refs = refs[1:-1]

    h = x_ref[...].astype(jnp.float32)

    for l in range(num_layers):
        w_ref = layer_refs[2 * l]
        bn_ref = layer_refs[2 * l + 1]

        # y = h @ W.T without materializing W.T: contract dim 1 of h with dim 1 of W.
        # bf16 operands, f32 accumulation on the MXU.
        h = lax.dot_general(
            h.astype(jnp.bfloat16),
            w_ref[...].astype(jnp.bfloat16),
            dimension_numbers=(((1,), (1,)), ((), ())),
            preferred_element_type=jnp.float32,
        )

        # Inference-mode BatchNorm1d folded to scale/shift; rsqrt goes to the EUP slot.
        bn = bn_ref[...].astype(jnp.float32)          # (4, Dout)
        gamma = bn[0:1, :]
        beta = bn[1:2, :]
        mean = bn[2:3, :]
        var = bn[3:4, :]
        scale = gamma * lax.rsqrt(var + jnp.float32(bn_eps))   # (1, Dout)
        shift = beta - mean * scale                            # (1, Dout)
        h = h * scale + shift

        # ReLU after every hidden layer; the final Linear+BN(affine=False) has no act.
        if l < num_layers - 1:
            h = jnp.maximum(h, 0.0)

    out_ref[...] = h.astype(out_ref.dtype)


def fcn_forward(x, layer_params, *, bn_eps=1e-5, tile_m=None):
    """Pallas TPU forward for FCN (norm_last_layer=True, drop_out=0.0).

    x:            (N, dim_layer[0]) f32
    layer_params: list of (W, bn_params) per layer,
                  W: (Dout, Din) f32 (PyTorch Linear weight, bias=False),
                  bn_params: (4, Dout) f32 rows = [gamma, beta, running_mean, running_var].
                  The last layer's BN is affine=False -> pass gamma=1, beta=0.
    """
    N, d_in = x.shape
    num_layers = len(layer_params)
    d_last = layer_params[-1][0].shape[0]

    if tile_m is None:
        tile_m = N if N <= 128 else 128
    assert N % tile_m == 0 and (tile_m == N or tile_m % 8 == 0), (N, tile_m)
    grid = (N // tile_m,)

    in_specs = [pl.BlockSpec((tile_m, d_in), lambda i: (i, 0))]
    args = [x]
    for w, bnp in layer_params:
        # Full-array blocks, constant block index -> stay resident across row tiles.
        in_specs.append(pl.BlockSpec(w.shape, lambda i: (0, 0)))
        in_specs.append(pl.BlockSpec(bnp.shape, lambda i: (0, 0)))
        args.append(w)
        args.append(bnp)

    out_specs = pl.BlockSpec((tile_m, d_last), lambda i: (i, 0))

    flops = 2 * N * sum(int(w.shape[0]) * int(w.shape[1]) for w, _ in layer_params)
    bytes_accessed = 4 * (
        x.size
        + sum(int(w.size) + int(b.size) for w, b in layer_params)
        + N * d_last
    )

    kernel = functools.partial(_fcn_kernel, num_layers=num_layers, bn_eps=bn_eps)

    return pl.pallas_call(
        kernel,
        out_shape=jax.ShapeDtypeStruct((N, d_last), jnp.float32),
        grid=grid,
        in_specs=in_specs,
        out_specs=out_specs,
        compiler_params=pltpu.CompilerParams(dimension_semantics=("parallel",)),
        cost_estimate=pl.CostEstimate(
            flops=flops, transcendentals=0, bytes_accessed=bytes_accessed
        ),
    )(*args)


def _reference_forward(x, layer_params, bn_eps=1e-5):
    """Pure-JAX reference mirroring the kernel numerics (bf16 matmul operands, f32 math)."""
    h = x.astype(jnp.float32)
    num_layers = len(layer_params)
    for l, (w, bnp) in enumerate(layer_params):
        h = lax.dot_general(
            h.astype(jnp.bfloat16),
            w.astype(jnp.bfloat16),
            dimension_numbers=(((1,), (1,)), ((), ())),
            preferred_element_type=jnp.float32,
        )
        gamma, beta, mean, var = bnp[0], bnp[1], bnp[2], bnp[3]
        h = (h - mean) * (gamma / jnp.sqrt(var + bn_eps)) + beta
        if l < num_layers - 1:
            h = jnp.maximum(h, 0.0)
    return h


if __name__ == "__main__":
    key = jax.random.PRNGKey(0)
    keys = jax.random.split(key, 16)

    # FCN(dim_layer=[32, 64, 64, 16], norm_last_layer=True, drop_out=0.0)
    dim_layer = [32, 64, 64, 16]
    N = 64  # batch

    x = jax.random.normal(keys[0], (N, dim_layer[0]), dtype=jnp.float32)

    layer_params = []
    ki = 1
    # Hidden layers: Linear(bias=False) + BatchNorm1d(affine) + ReLU
    for i in range(1, len(dim_layer) - 1):
        din, dout = dim_layer[i - 1], dim_layer[i]
        w = jax.random.normal(keys[ki], (dout, din), dtype=jnp.float32) / math.sqrt(din)
        ki += 1
        gamma = 1.0 + 0.1 * jax.random.normal(keys[ki], (dout,), dtype=jnp.float32); ki += 1
        beta = 0.1 * jax.random.normal(keys[ki], (dout,), dtype=jnp.float32); ki += 1
        mean = 0.1 * jax.random.normal(keys[ki], (dout,), dtype=jnp.float32); ki += 1
        var = jnp.abs(1.0 + 0.1 * jax.random.normal(keys[ki], (dout,), dtype=jnp.float32)); ki += 1
        layer_params.append((w, jnp.stack([gamma, beta, mean, var], axis=0)))

    # Final layer (norm_last_layer=True): Linear(bias=False) + BatchNorm1d(affine=False)
    din, dout = dim_layer[-2], dim_layer[-1]
    w = jax.random.normal(keys[ki], (dout, din), dtype=jnp.float32) / math.sqrt(din); ki += 1
    mean = 0.1 * jax.random.normal(keys[ki], (dout,), dtype=jnp.float32); ki += 1
    var = jnp.abs(1.0 + 0.1 * jax.random.normal(keys[ki], (dout,), dtype=jnp.float32)); ki += 1
    layer_params.append(
        (w, jnp.stack([jnp.ones((dout,), jnp.float32), jnp.zeros((dout,), jnp.float32), mean, var], axis=0))
    )

    out = fcn_forward(x, layer_params, tile_m=32)
    out = jax.block_until_ready(out)

    ref = _reference_forward(x, layer_params)
    assert out.shape == ref.shape, (out.shape, ref.shape)
    assert jnp.allclose(out, ref, rtol=1e-3, atol=1e-3), float(jnp.max(jnp.abs(out - ref)))

    print("KERNEL_OK")
</pallas_src>

<mosaic_0001>
module attributes {stable_mosaic.version = 11 : i64} {
  func.func @_fcn_kernel(%arg0: i32, %arg1: memref<32x32xf32, #tpu.memory_space<vmem>>, %arg2: memref<64x32xf32, #tpu.memory_space<vmem>>, %arg3: memref<4x64xf32, #tpu.memory_space<vmem>>, %arg4: memref<64x64xf32, #tpu.memory_space<vmem>>, %arg5: memref<4x64xf32, #tpu.memory_space<vmem>>, %arg6: memref<16x64xf32, #tpu.memory_space<vmem>>, %arg7: memref<4x16xf32, #tpu.memory_space<vmem>>, %arg8: memref<32x16xf32, #tpu.memory_space<vmem>>) attributes {dimension_semantics = [#tpu.dimension_semantics<parallel>], iteration_bounds = array<i64: 2>, scalar_prefetch = 0 : i64, scratch_operands = 0 : i64, tpu.core_type = #tpu.core_type<tc>, window_params = [{transform_indices = @transform_0, window_bounds = array<i64: 32, 32>}, {pipeline_mode = #tpu.pipeline_mode<synchronous>, transform_indices = @transform_1, window_bounds = array<i64: 64, 32>}, {pipeline_mode = #tpu.pipeline_mode<synchronous>, transform_indices = @transform_2, window_bounds = array<i64: 4, 64>}, {pipeline_mode = #tpu.pipeline_mode<synchronous>, transform_indices = @transform_3, window_bounds = array<i64: 64, 64>}, {pipeline_mode = #tpu.pipeline_mode<synchronous>, transform_indices = @transform_4, window_bounds = array<i64: 4, 64>}, {pipeline_mode = #tpu.pipeline_mode<synchronous>, transform_indices = @transform_5, window_bounds = array<i64: 16, 64>}, {pipeline_mode = #tpu.pipeline_mode<synchronous>, transform_indices = @transform_6, window_bounds = array<i64: 4, 16>}, {transform_indices = @transform_7, window_bounds = array<i64: 32, 16>}]} {
    %c0 = arith.constant 0 : index
    %c0_0 = arith.constant 0 : index
    %0 = vector.load %arg1[%c0, %c0_0] : memref<32x32xf32, #tpu.memory_space<vmem>>, vector<32x32xf32>
    %1 = arith.truncf %0 : vector<32x32xf32> to vector<32x32xbf16>
    %c0_1 = arith.constant 0 : index
    %c0_2 = arith.constant 0 : index
    %2 = vector.load %arg2[%c0_1, %c0_2] : memref<64x32xf32, #tpu.memory_space<vmem>>, vector<64x32xf32>
    %3 = arith.truncf %2 : vector<64x32xf32> to vector<64x32xbf16>
    %cst = arith.constant dense<0.000000e+00> : vector<32x64xf32>
    %4 = tpu.matmul %1, %3, %cst {dimension_numbers = #tpu.dot_dimension_numbers<[1], [1], [0], [0], [0, 0, 1, 0], [], []>} : vector<32x32xbf16>, vector<64x32xbf16>, vector<32x64xf32> -> vector<32x64xf32>
    %c0_3 = arith.constant 0 : index
    %c0_4 = arith.constant 0 : index
    %5 = vector.load %arg3[%c0_3, %c0_4] : memref<4x64xf32, #tpu.memory_space<vmem>>, vector<4x64xf32>
    %6 = vector.extract_strided_slice %5 {offsets = [0, 0], sizes = [1, 64], strides = [1, 1]} : vector<4x64xf32> to vector<1x64xf32>
    %7 = vector.extract_strided_slice %5 {offsets = [1, 0], sizes = [1, 64], strides = [1, 1]} : vector<4x64xf32> to vector<1x64xf32>
    %8 = vector.extract_strided_slice %5 {offsets = [2, 0], sizes = [1, 64], strides = [1, 1]} : vector<4x64xf32> to vector<1x64xf32>
    %9 = vector.extract_strided_slice %5 {offsets = [3, 0], sizes = [1, 64], strides = [1, 1]} : vector<4x64xf32> to vector<1x64xf32>
    %cst_5 = arith.constant 9.99999974E-6 : f32
    %10 = vector.broadcast %cst_5 : f32 to vector<1x64xf32>
    %11 = arith.addf %9, %10 : vector<1x64xf32>
    %12 = math.rsqrt %11 : vector<1x64xf32>
    %13 = arith.mulf %6, %12 : vector<1x64xf32>
    %14 = arith.mulf %8, %13 : vector<1x64xf32>
    %15 = arith.subf %7, %14 : vector<1x64xf32>
    %16 = vector.broadcast %13 : vector<1x64xf32> to vector<32x64xf32>
    %17 = arith.mulf %4, %16 : vector<32x64xf32>
    %18 = vector.broadcast %15 : vector<1x64xf32> to vector<32x64xf32>
    %19 = arith.addf %17, %18 : vector<32x64xf32>
    %cst_6 = arith.constant 0.000000e+00 : f32
    %20 = vector.broadcast %cst_6 : f32 to vector<32x64xf32>
    %21 = arith.maximumf %19, %20 : vector<32x64xf32>
    %22 = arith.truncf %21 : vector<32x64xf32> to vector<32x64xbf16>
    %c0_7 = arith.constant 0 : index
    %c0_8 = arith.constant 0 : index
    %23 = vector.load %arg4[%c0_7, %c0_8] : memref<64x64xf32, #tpu.memory_space<vmem>>, vector<64x64xf32>
    %24 = arith.truncf %23 : vector<64x64xf32> to vector<64x64xbf16>
    %cst_9 = arith.constant dense<0.000000e+00> : vector<32x64xf32>
    %25 = tpu.matmul %22, %24, %cst_9 {dimension_numbers = #tpu.dot_dimension_numbers<[1], [1], [0], [0], [0, 0, 1, 0], [], []>} : vector<32x64xbf16>, vector<64x64xbf16>, vector<32x64xf32> -> vector<32x64xf32>
    %c0_10 = arith.constant 0 : index
    %c0_11 = arith.constant 0 : index
    %26 = vector.load %arg5[%c0_10, %c0_11] : memref<4x64xf32, #tpu.memory_space<vmem>>, vector<4x64xf32>
    %27 = vector.extract_strided_slice %26 {offsets = [0, 0], sizes = [1, 64], strides = [1, 1]} : vector<4x64xf32> to vector<1x64xf32>
    %28 = vector.extract_strided_slice %26 {offsets = [1, 0], sizes = [1, 64], strides = [1, 1]} : vector<4x64xf32> to vector<1x64xf32>
    %29 = vector.extract_strided_slice %26 {offsets = [2, 0], sizes = [1, 64], strides = [1, 1]} : vector<4x64xf32> to vector<1x64xf32>
    %30 = vector.extract_strided_slice %26 {offsets = [3, 0], sizes = [1, 64], strides = [1, 1]} : vector<4x64xf32> to vector<1x64xf32>
    %cst_12 = arith.constant 9.99999974E-6 : f32
    %31 = vector.broadcast %cst_12 : f32 to vector<1x64xf32>
    %32 = arith.addf %30, %31 : vector<1x64xf32>
    %33 = math.rsqrt %32 : vector<1x64xf32>
    %34 = arith.mulf %27, %33 : vector<1x64xf32>
    %35 = arith.mulf %29, %34 : vector<1x64xf32>
    %36 = arith.subf %28, %35 : vector<1x64xf32>
    %37 = vector.broadcast %34 : vector<1x64xf32> to vector<32x64xf32>
    %38 = arith.mulf %25, %37 : vector<32x64xf32>
    %39 = vector.broadcast %36 : vector<1x64xf32> to vector<32x64xf32>
    %40 = arith.addf %38, %39 : vector<32x64xf32>
    %cst_13 = arith.constant 0.000000e+00 : f32
    %41 = vector.broadcast %cst_13 : f32 to vector<32x64xf32>
    %42 = arith.maximumf %40, %41 : vector<32x64xf32>
    %43 = arith.truncf %42 : vector<32x64xf32> to vector<32x64xbf16>
    %c0_14 = arith.constant 0 : index
    %c0_15 = arith.constant 0 : index
    %44 = vector.load %arg6[%c0_14, %c0_15] : memref<16x64xf32, #tpu.memory_space<vmem>>, vector<16x64xf32>
    %45 = arith.truncf %44 : vector<16x64xf32> to vector<16x64xbf16>
    %cst_16 = arith.constant dense<0.000000e+00> : vector<32x16xf32>
    %46 = tpu.matmul %43, %45, %cst_16 {dimension_numbers = #tpu.dot_dimension_numbers<[1], [1], [0], [0], [0, 0, 1, 0], [], []>} : vector<32x64xbf16>, vector<16x64xbf16>, vector<32x16xf32> -> vector<32x16xf32>
    %c0_17 = arith.constant 0 : index
    %c0_18 = arith.constant 0 : index
    %47 = vector.load %arg7[%c0_17, %c0_18] : memref<4x16xf32, #tpu.memory_space<vmem>>, vector<4x16xf32>
    %48 = vector.extract_strided_slice %47 {offsets = [0, 0], sizes = [1, 16], strides = [1, 1]} : vector<4x16xf32> to vector<1x16xf32>
    %49 = vector.extract_strided_slice %47 {offsets = [1, 0], sizes = [1, 16], strides = [1, 1]} : vector<4x16xf32> to vector<1x16xf32>
    %50 = vector.extract_strided_slice %47 {offsets = [2, 0], sizes = [1, 16], strides = [1, 1]} : vector<4x16xf32> to vector<1x16xf32>
    %51 = vector.extract_strided_slice %47 {offsets = [3, 0], sizes = [1, 16], strides = [1, 1]} : vector<4x16xf32> to vector<1x16xf32>
    %cst_19 = arith.constant 9.99999974E-6 : f32
    %52 = vector.broadcast %cst_19 : f32 to vector<1x16xf32>
    %53 = arith.addf %51, %52 : vector<1x16xf32>
    %54 = math.rsqrt %53 : vector<1x16xf32>
    %55 = arith.mulf %48, %54 : vector<1x16xf32>
    %56 = arith.mulf %50, %55 : vector<1x16xf32>
    %57 = arith.subf %49, %56 : vector<1x16xf32>
    %58 = vector.broadcast %55 : vector<1x16xf32> to vector<32x16xf32>
    %59 = arith.mulf %46, %58 : vector<32x16xf32>
    %60 = vector.broadcast %57 : vector<1x16xf32> to vector<32x16xf32>
    %61 = arith.addf %59, %60 : vector<32x16xf32>
    %c0_20 = arith.constant 0 : index
    %c0_21 = arith.constant 0 : index
    %62 = vector.load %arg8[%c0_20, %c0_21] : memref<32x16xf32, #tpu.memory_space<vmem>>, vector<32x16xf32>
    tpu.vector_store %arg8[%c0_20, %c0_21], %61 {strides = array<i32>} : memref<32x16xf32, #tpu.memory_space<vmem>>, vector<32x16xf32>,
    return
  }
  func.func @transform_0(%arg0: i32) -> (i32, i32) {
    %c0_i32 = arith.constant 0 : i32
    %c0_i32_0 = arith.constant 0 : i32
    return %arg0, %c0_i32 : i32, i32
  }
  func.func @transform_1(%arg0: i32) -> (i32, i32) {
    %c0_i32 = arith.constant 0 : i32
    %c0_i32_0 = arith.constant 0 : i32
    %c0_i32_1 = arith.constant 0 : i32
    return %c0_i32, %c0_i32_0 : i32, i32
  }
  func.func @transform_2(%arg0: i32) -> (i32, i32) {
    %c0_i32 = arith.constant 0 : i32
    %c0_i32_0 = arith.constant 0 : i32
    %c0_i32_1 = arith.constant 0 : i32
    return %c0_i32, %c0_i32_0 : i32, i32
  }
  func.func @transform_3(%arg0: i32) -> (i32, i32) {
    %c0_i32 = arith.constant 0 : i32
    %c0_i32_0 = arith.constant 0 : i32
    %c0_i32_1 = arith.constant 0 : i32
    return %c0_i32, %c0_i32_0 : i32, i32
  }
  func.func @transform_4(%arg0: i32) -> (i32, i32) {
    %c0_i32 = arith.constant 0 : i32
    %c0_i32_0 = arith.constant 0 : i32
    %c0_i32_1 = arith.constant 0 : i32
    return %c0_i32, %c0_i32_0 : i32, i32
  }
  func.func @transform_5(%arg0: i32) -> (i32, i32) {
    %c0_i32 = arith.constant 0 : i32
    %c0_i32_0 = arith.constant 0 : i32
    %c0_i32_1 = arith.constant 0 : i32
    return %c0_i32, %c0_i32_0 : i32, i32
  }
  func.func @transform_6(%arg0: i32) -> (i32, i32) {
    %c0_i32 = arith.constant 0 : i32
    %c0_i32_0 = arith.constant 0 : i32
    %c0_i32_1 = arith.constant 0 : i32
    return %c0_i32, %c0_i32_0 : i32, i32
  }
  func.func @transform_7(%arg0: i32) -> (i32, i32) {
    %c0_i32 = arith.constant 0 : i32
    %c0_i32_0 = arith.constant 0 : i32
    return %arg0, %c0_i32 : i32, i32
  }
}

</mosaic_0001>

<llo_original>
// kernel: tpu_custom_call.1
$region0: #{tpu_custom_call.1}
  #allocation0 [shape = 'u32[]', space=smem, size = 0x4, offset = 0x4, fixed_abs, tag = 'smem constant byte address 0x4 - core index']
  #allocation1 [shape = 'u32[144,128]{1,0:T(1,128)}', space=vmem, size = 0x12000, scoped, tag = 'internal scratch']
  %s0 = inlined_call_operand.vmem [shape: f32[64,32], index: 0, kind: input, shape index: {}]
  %s1 = inlined_call_operand.vmem [shape: f32[64,32], index: 1, kind: input, shape index: {}]
  %s2 = inlined_call_operand.vmem [shape: f32[4,64], index: 2, kind: input, shape index: {}]
  %s3 = inlined_call_operand.vmem [shape: f32[64,64], index: 3, kind: input, shape index: {}]
  %s4 = inlined_call_operand.vmem [shape: f32[4,64], index: 4, kind: input, shape index: {}]
  %s5 = inlined_call_operand.vmem [shape: f32[16,64], index: 5, kind: input, shape index: {}]
  %s6 = inlined_call_operand.vmem [shape: f32[4,16], index: 6, kind: input, shape index: {}]
  %s7 = inlined_call_operand.vmem [shape: f32[64,16], index: 7, kind: output, shape index: {}]
  %s8 = sld [smem:[#allocation0]]
  $region61: #{tpu_custom_call.1} parent=0
    _
  %s10 = ssub.s32 1, %s8
  %s11 = scalar_select 0, %s10, %s8
  loop: start=0, step=1, limit=4
  $region2: #{tpu_custom_call.1} parent=0 // loop_pre_header
    _
  $region3: #{tpu_custom_call.1} parent=0 // loop_header
    %s13 = sphi 0, %s17
    %p14 = scmp.ge.s32.totalorder %s13, 4
    %s23 = sphi 0, %s25
    %s26 = sphi 0, %s23
    %s27 = sphi 0, %s26
    %s43 = sphi 0, %s27
    %s47 = sphi 0, %s47
    %s49 = sphi 0, %s47
    %s50 = sphi 0, %s49
    %s64 = sphi 0, %s50
    %s68 = sphi 0, %s68
    %s70 = sphi 0, %s68
    %s71 = sphi 0, %s70
    %s85 = sphi 0, %s71
    %s89 = sphi 0, %s89
    %s91 = sphi 0, %s89
    %s92 = sphi 0, %s91
    %s106 = sphi 0, %s92
    %s110 = sphi 0, %s110
    %s112 = sphi 0, %s110
    %s113 = sphi 0, %s112
    %s127 = sphi 0, %s113
    %s131 = sphi 0, %s131
    %s133 = sphi 0, %s131
    %s134 = sphi 0, %s133
    %s148 = sphi 0, %s134
    %s152 = sphi 0, %s152
    %s154 = sphi 0, %s152
    %s155 = sphi 0, %s154
    %s169 = sphi 0, %s155
    %s175 = sphi 0, %s177
    %s178 = sphi 0, %s175
    %s179 = sphi 0, %s178
    %s195 = sphi 0, %s179
  $region4: #{tpu_custom_call.1} parent=0 // loop_header_branch
    %16 = sbr.rel (%p14) target = $region8
  $region5: #{tpu_custom_call.1} parent=0 // loop_body
    %s18 = ssub.s32 %s13, 1
    %s19 = ssub.s32 %s13, 2
    %s20 = sadd.s32 %s13, 1
    %s21 = ssub.s32 %s13, %s20
    %p22 = scmp.eq.s32.totalorder %s21, 0
    %s24 = sadd.s32 %s23, 1
    %s25 = scalar_select %p22, %s23, %s24
    %p28 = pneg %p22
    %p29 = scmp.eq.s32.totalorder %s13, 1
    %p30 = por %p28, %p29
    %p31 = scmp.ne.s32.totalorder %s23, %s26
    %p32 = scmp.eq.s32.totalorder %s13, 0
    %p33 = por %p31, %p32
    %p34 = scmp.ne.s32.totalorder %s23, %s26
    %p35 = scmp.eq.s32.totalorder %s18, 1
    %p36 = por %p34, %p35
    %p37 = scmp.ne.s32.totalorder %s26, %s27
    %p38 = scmp.eq.s32.totalorder %s18, 0
    %p39 = por %p37, %p38
    %p40 = scmp.ne.s32.totalorder %s26, %s27
    %p41 = scmp.eq.s32.totalorder %s19, 1
    %p42 = por %p40, %p41
    %p44 = scmp.ne.s32.totalorder %s27, %s43
    %p45 = scmp.eq.s32.totalorder %s19, 0
    %p46 = por %p44, %p45
    %s48 = sadd.s32 %s47, 1
    %p51 = scmp.eq.s32.totalorder %s13, 1
    %p52 = scmp.ne.s32.totalorder %s47, %s49
    %p53 = scmp.eq.s32.totalorder %s13, 0
    %p54 = por %p52, %p53
    %p55 = scmp.ne.s32.totalorder %s47, %s49
    %p56 = scmp.eq.s32.totalorder %s18, 1
    %p57 = por %p55, %p56
    %p58 = scmp.ne.s32.totalorder %s49, %s50
    %p59 = scmp.eq.s32.totalorder %s18, 0
    %p60 = por %p58, %p59
    %p61 = scmp.ne.s32.totalorder %s49, %s50
    %p62 = scmp.eq.s32.totalorder %s19, 1
    %p63 = por %p61, %p62
    %p65 = scmp.ne.s32.totalorder %s50, %s64
    %p66 = scmp.eq.s32.totalorder %s19, 0
    %p67 = por %p65, %p66
    %s69 = sadd.s32 %s68, 1
    %p72 = scmp.eq.s32.totalorder %s13, 1
    %p73 = scmp.ne.s32.totalorder %s68, %s70
    %p74 = scmp.eq.s32.totalorder %s13, 0
    %p75 = por %p73, %p74
    %p76 = scmp.ne.s32.totalorder %s68, %s70
    %p77 = scmp.eq.s32.totalorder %s18, 1
    %p78 = por %p76, %p77
    %p79 = scmp.ne.s32.totalorder %s70, %s71
    %p80 = scmp.eq.s32.totalorder %s18, 0
    %p81 = por %p79, %p80
    %p82 = scmp.ne.s32.totalorder %s70, %s71
    %p83 = scmp.eq.s32.totalorder %s19, 1
    %p84 = por %p82, %p83
    %p86 = scmp.ne.s32.totalorder %s71, %s85
    %p87 = scmp.eq.s32.totalorder %s19, 0
    %p88 = por %p86, %p87
    %s90 = sadd.s32 %s89, 1
    %p93 = scmp.eq.s32.totalorder %s13, 1
    %p94 = scmp.ne.s32.totalorder %s89, %s91
    %p95 = scmp.eq.s32.totalorder %s13, 0
    %p96 = por %p94, %p95
    %p97 = scmp.ne.s32.totalorder %s89, %s91
    %p98 = scmp.eq.s32.totalorder %s18, 1
    %p99 = por %p97, %p98
    %p100 = scmp.ne.s32.totalorder %s91, %s92
    %p101 = scmp.eq.s32.totalorder %s18, 0
    %p102 = por %p100, %p101
    %p103 = scmp.ne.s32.totalorder %s91, %s92
    %p104 = scmp.eq.s32.totalorder %s19, 1
    %p105 = por %p103, %p104
    %p107 = scmp.ne.s32.totalorder %s92, %s106
    %p108 = scmp.eq.s32.totalorder %s19, 0
    %p109 = por %p107, %p108
    %s111 = sadd.s32 %s110, 1
    %p114 = scmp.eq.s32.totalorder %s13, 1
    %p115 = scmp.ne.s32.totalorder %s110, %s112
    %p116 = scmp.eq.s32.totalorder %s13, 0
    %p117 = por %p115, %p116
    %p118 = scmp.ne.s32.totalorder %s110, %s112
    %p119 = scmp.eq.s32.totalorder %s18, 1
    %p120 = por %p118, %p119
    %p121 = scmp.ne.s32.totalorder %s112, %s113
    %p122 = scmp.eq.s32.totalorder %s18, 0
    %p123 = por %p121, %p122
    %p124 = scmp.ne.s32.totalorder %s112, %s113
    %p125 = scmp.eq.s32.totalorder %s19, 1
    %p126 = por %p124, %p125
    %p128 = scmp.ne.s32.totalorder %s113, %s127
    %p129 = scmp.eq.s32.totalorder %s19, 0
    %p130 = por %p128, %p129
    %s132 = sadd.s32 %s131, 1
    %p135 = scmp.eq.s32.totalorder %s13, 1
    %p136 = scmp.ne.s32.totalorder %s131, %s133
    %p137 = scmp.eq.s32.totalorder %s13, 0
    %p138 = por %p136, %p137
    %p139 = scmp.ne.s32.totalorder %s131, %s133
    %p140 = scmp.eq.s32.totalorder %s18, 1
    %p141 = por %p139, %p140
    %p142 = scmp.ne.s32.totalorder %s133, %s134
    %p143 = scmp.eq.s32.totalorder %s18, 0
    %p144 = por %p142, %p143
    %p145 = scmp.ne.s32.totalorder %s133, %s134
    %p146 = scmp.eq.s32.totalorder %s19, 1
    %p147 = por %p145, %p146
    %p149 = scmp.ne.s32.totalorder %s134, %s148
    %p150 = scmp.eq.s32.totalorder %s19, 0
    %p151 = por %p149, %p150
    %s153 = sadd.s32 %s152, 1
    %p156 = scmp.eq.s32.totalorder %s13, 1
    %p157 = scmp.ne.s32.totalorder %s152, %s154
    %p158 = scmp.eq.s32.totalorder %s13, 0
    %p159 = por %p157, %p158
    %p160 = scmp.ne.s32.totalorder %s152, %s154
    %p161 = scmp.eq.s32.totalorder %s18, 1
    %p162 = por %p160, %p161
    %p163 = scmp.ne.s32.totalorder %s154, %s155
    %p164 = scmp.eq.s32.totalorder %s18, 0
    %p165 = por %p163, %p164
    %p166 = scmp.ne.s32.totalorder %s154, %s155
    %p167 = scmp.eq.s32.totalorder %s19, 1
    %p168 = por %p166, %p167
    %p170 = scmp.ne.s32.totalorder %s155, %s169
    %p171 = scmp.eq.s32.totalorder %s19, 0
    %p172 = por %p170, %p171
    %s173 = ssub.s32 %s13, %s20
    %p174 = scmp.eq.s32.totalorder %s173, 0
    %s176 = sadd.s32 %s175, 1
    %s177 = scalar_select %p174, %s175, %s176
    %p180 = pneg %p174
    %p181 = scmp.eq.s32.totalorder %s13, 1
    %p182 = por %p180, %p181
    %p183 = scmp.ne.s32.totalorder %s175, %s178
    %p184 = scmp.eq.s32.totalorder %s13, 0
    %p185 = por %p183, %p184
    %p186 = scmp.ne.s32.totalorder %s175, %s178
    %p187 = scmp.eq.s32.totalorder %s18, 1
    %p188 = por %p186, %p187
    %p189 = scmp.ne.s32.totalorder %s178, %s179
    %p190 = scmp.eq.s32.totalorder %s18, 0
    %p191 = por %p189, %p190
    %p192 = scmp.ne.s32.totalorder %s178, %s179
    %p193 = scmp.eq.s32.totalorder %s19, 1
    %p194 = por %p192, %p193
    %p196 = scmp.ne.s32.totalorder %s179, %s195
    %p197 = scmp.eq.s32.totalorder %s19, 0
    %p198 = por %p196, %p197
    %p199 = scmp.le.s32.totalorder 1, %s13
    %p200 = scmp.lt.s32.totalorder %s13, 3
    %p201 = pnand %p199, %p200
    %p202 = pneg %p201
    // Predicated region
    $region9: #{tpu_custom_call.1} parent=5 // pred_check
      _
    $region10: #{tpu_custom_call.1} parent=5 // pred_check_branch
      %204 = sbr.rel (%p201) target = $region12
    $region11: #{tpu_custom_call.1} parent=5 // pred_region
      %s205 = ssub.s32 %s13, 1
      // Predicated region
      $region13: #{tpu_custom_call.1} parent=11 // pred_check
        %p206 = pneg %p60
      $region14: #{tpu_custom_call.1} parent=11 // pred_check_branch
        %208 = sbr.rel (%p206) target = $region16
      $region15: #{tpu_custom_call.1} parent=11 // pred_region
        _
      $region16: #{tpu_custom_call.1} parent=11 // pred_fallthru
        _
      // Predicated region
      $region17: #{tpu_custom_call.1} parent=11 // pred_check
        %p209 = pneg %p81
      $region18: #{tpu_custom_call.1} parent=11 // pred_check_branch
        %211 = sbr.rel (%p209) target = $region20
      $region19: #{tpu_custom_call.1} parent=11 // pred_region
        _
      $region20: #{tpu_custom_call.1} parent=11 // pred_fallthru
        _
      // Predicated region
      $region21: #{tpu_custom_call.1} parent=11 // pred_check
        %p212 = pneg %p102
      $region22: #{tpu_custom_call.1} parent=11 // pred_check_branch
        %214 = sbr.rel (%p212) target = $region24
      $region23: #{tpu_custom_call.1} parent=11 // pred_region
        _
      $region24: #{tpu_custom_call.1} parent=11 // pred_fallthru
        _
      // Predicated region
      $region25: #{tpu_custom_call.1} parent=11 // pred_check
        %p215 = pneg %p123
      $region26: #{tpu_custom_call.1} parent=11 // pred_check_branch
        %217 = sbr.rel (%p215) target = $region28
      $region27: #{tpu_custom_call.1} parent=11 // pred_region
        _
      $region28: #{tpu_custom_call.1} parent=11 // pred_fallthru
        _
      // Predicated region
      $region29: #{tpu_custom_call.1} parent=11 // pred_check
        %p218 = pneg %p144
      $region30: #{tpu_custom_call.1} parent=11 // pred_check_branch
        %220 = sbr.rel (%p218) target = $region32
      $region31: #{tpu_custom_call.1} parent=11 // pred_region
        _
      $region32: #{tpu_custom_call.1} parent=11 // pred_fallthru
        _
      // Predicated region
      $region33: #{tpu_custom_call.1} parent=11 // pred_check
        %p221 = pneg %p165
      $region34: #{tpu_custom_call.1} parent=11 // pred_check_branch
        %223 = sbr.rel (%p221) target = $region36
      $region35: #{tpu_custom_call.1} parent=11 // pred_region
        _
      $region36: #{tpu_custom_call.1} parent=11 // pred_fallthru
        _
    $region12: #{tpu_custom_call.1} parent=5 // pred_fallthru
      _
    %p224 = scmp.lt.s32.totalorder %s13, 2
    // Predicated region
    $region37: #{tpu_custom_call.1} parent=5 // pred_check
      %p225 = pneg %p224
    $region38: #{tpu_custom_call.1} parent=5 // pred_check_branch
      %227 = sbr.rel (%p225) target = $region40
    $region39: #{tpu_custom_call.1} parent=5 // pred_region
      // Predicated region
      $region41: #{tpu_custom_call.1} parent=39 // pred_check
        %p228 = pneg %p33
      $region42: #{tpu_custom_call.1} parent=39 // pred_check_branch
        %230 = sbr.rel (%p228) target = $region44
      $region43: #{tpu_custom_call.1} parent=39 // pred_region
        %s231 = smul.u32 4, %s13
        %p232 = scmp.lt.s32.totalorder %s231, 7
        %s233 = scalar_select %p232, %s231, 7
        %s234 = smul.addr %s233, 8
        %s235 = scalar_lea.vmem %s0, %s234
        %s236 = smul.u32 4, %s13
      $region44: #{tpu_custom_call.1} parent=39 // pred_fallthru
        _
    $region40: #{tpu_custom_call.1} parent=5 // pred_fallthru
      _
    %p237 = scmp.le.s32.totalorder 1, %s13
    %p238 = scmp.lt.s32.totalorder %s13, 3
    %p239 = pnand %p237, %p238
    %p240 = pneg %p239
    // Predicated region
    $region45: #{tpu_custom_call.1} parent=5 // pred_check
      _
    $region46: #{tpu_custom_call.1} parent=5 // pred_check_branch
      %242 = sbr.rel (%p239) target = $region48
    $region47: #{tpu_custom_call.1} parent=5 // pred_region
      %s243 = ssub.s32 %s13, 1
      %s244 = smul.u32 4, %s18
      %p245 = scmp.lt.s32.totalorder %s244, 7
      %s246 = scalar_select %p245, %s244, 7
      %s247 = smul.addr %s246, 8
      %s248 = scalar_lea.vmem %s0, %s247
      %p249 = pneg %p39
      %p250 = pneg %p36
      %p251 = pneg %p60
      %p252 = pneg %p57
      %p253 = pneg %p81
      %p254 = pneg %p78
      %p255 = pneg %p102
      %p256 = pneg %p99
      %p257 = pneg %p123
      %p258 = pneg %p120
      %p259 = pneg %p144
      %p260 = pneg %p141
      %p261 = pneg %p165
      %p262 = pneg %p162
      %p263 = pneg %p191
      %p264 = pneg %p188
      %s265 = smul.u32 4, %s18
      %p266 = scmp.lt.s32.totalorder %s265, 7
      %s267 = scalar_select %p266, %s265, 7
      %s268 = smul.addr %s267, 8
      %s269 = scalar_lea.vmem %s7, %s268
      %s270 = smul.u32 4, %s18
      %p271 = scmp.lt.s32.totalorder %s270, 7
      %s272 = scalar_select %p271, %s270, 7
      %s273 = smul.addr %s272, 8
      %s274 = scalar_lea.vmem %s0, %s273
      %s275 = smul.u32 4, %s18
      %s276 = smul.u32 4, %s18
      %p277 = scmp.lt.s32.totalorder %s276, 7
      %s278 = scalar_select %p277, %s276, 7
      %s279 = smul.addr %s278, 8
      %s280 = scalar_lea.vmem %s7, %s279
      %s281 = smul.u32 4, %s18
      %v283 = vld [vmem:[%s274] sm:$0xff]
      %v284 = vld [vmem:[%s274 + $0x8] sm:$0xff]
      %v285 = vld [vmem:[%s274 + $0x10] sm:$0xff]
      %v286 = vld [vmem:[%s274 + $0x18] sm:$0xff]
      %v287 = vpack.c.bf16 %v284, %v283
      %v288 = vpack.c.bf16 %v286, %v285
      %v289 = vld [vmem:[%s1] sm:$0xff]
      %v290 = vld [vmem:[%s1 + $0x8] sm:$0xff]
      %v291 = vld [vmem:[%s1 + $0x10] sm:$0xff]
      %v292 = vld [vmem:[%s1 + $0x18] sm:$0xff]
      %v293 = vld [vmem:[%s1 + $0x20] sm:$0xff]
      %v294 = vld [vmem:[%s1 + $0x28] sm:$0xff]
      %v295 = vld [vmem:[%s1 + $0x30] sm:$0xff]
      %v296 = vld [vmem:[%s1 + $0x38] sm:$0xff]
      %v297 = vpack.c.bf16 %v290, %v289
      %v298 = vpack.c.bf16 %v292, %v291
      %v299 = vpack.c.bf16 %v294, %v293
      %v300 = vpack.c.bf16 %v296, %v295
      %vm301 = vcmask 261120
      %v303 = vsel %vm301, %v287, 0
      %v306 = vsel %vm301, %v288, 0
      %v309 = vsel %vm301, %v297, 0
      %v312 = vsel %vm301, %v298, 0
      %v315 = vsel %vm301, %v299, 0
      %v318 = vsel %vm301, %v300, 0
      %320 = vmatprep.subr.bf16.mxu0 0
      %321 = vmatpush1.bf16.xpose.msra.mxu0 0
      %322 = vmatprep.subr.bf16.mxu0 0
      %323 = vmatpush1.bf16.xpose.msra.mxu0 0
      %324 = vmatprep.subr.bf16.mxu0 0
      %325 = vmatpush1.bf16.xpose.msra.mxu0 0
      %326 = vmatprep.subr.bf16.mxu0 0
      %327 = vmatpush1.bf16.xpose.msra.mxu0 0
      %328 = vmatprep.subr.bf16.mxu0 0
      %329 = vmatpush1.bf16.xpose.msra.mxu0 %v318
      %330 = vmatprep.subr.bf16.mxu0 0
      %331 = vmatpush1.bf16.xpose.msra.mxu0 %v315
      %332 = vmatprep.subr.bf16.mxu0 0
      %333 = vmatpush1.bf16.xpose.msra.mxu0 %v312
      %334 = vmatprep.subr.bf16.mxu0 0
      %335 = vmatpush1.bf16.xpose.msra.mxu0 %v309
      %336 = vmatprep.subr.bf16.mxu0 0
      %337 = vmatpush2.bf16.xpose.msra.mxu0 0
      %338 = vmatprep.subr.bf16.mxu0 0
      %339 = vmatpush2.bf16.xpose.msra.mxu0 0
      %340 = vmatprep.subr.bf16.mxu0 0
      %341 = vmatpush2.bf16.xpose.msra.mxu0 0
      %342 = vmatprep.subr.bf16.mxu0 0
      %343 = vmatpush2.bf16.xpose.msra.mxu0 0
      %344 = vmatprep.subr.bf16.mxu0 0
      %345 = vmatpush2.bf16.xpose.msra.mxu0 0
      %346 = vmatprep.subr.bf16.mxu0 0
      %347 = vmatpush2.bf16.xpose.msra.mxu0 0
      %348 = vmatprep.subr.bf16.mxu0 0
      %349 = vmatpush2.bf16.xpose.msra.mxu0 0
      %350 = vmatprep.subr.bf16.mxu0 0
      %351 = vmatpush2.bf16.xpose.msra.mxu0 0
      %352 = vmatprep.mubr.bf16.mxu0 0
      %353 = vmatmul.mubr.bf16.gmra.mxu0 %v303
      %v354 = vpop.f32.mrf.mxu0
      %v355 = vadd.f32 0.0, %v354
      %v356 = vpop.f32.mrf.mxu0
      %v357 = vpop.f32.mrf.mxu0
      %v358 = vadd.f32 0.0, %v357
      %v359 = vpop.f32.mrf.mxu0
      %360 = vmatprep.mubr.bf16.mxu0 0
      %361 = vmatmul.mubr.bf16.gmra.mxu0 %v306
      %v362 = vpop.f32.mrf.mxu0
      %v363 = vadd.f32 0.0, %v362
      %v364 = vpop.f32.mrf.mxu0
      %v365 = vpop.f32.mrf.mxu0
      %v366 = vadd.f32 0.0, %v365
      %v367 = vpop.f32.mrf.mxu0
      %368 = vdwg.mxu0
      %v369 = vld [vmem:[%s2] sm:$0xf]
      %v370 = vadd.f32 %v369, 1e-05
      %v371 = vrsqrt.pop %v370
      %v373 = vrot.slane %v371, 3
      %v375 = vmul.f32 %v369, %v373
      %v377 = vrot.slane %v375, 6
      %v379 = vmul.f32 %v369, %v377
      %v381 = vrot.slane %v379, 1
      %v383 = vsub.f32 %v369, %v381
      %v384 = vlaneseq
      %v385 = vshrl.u32 %v384, 7
      %v386 = vsub.s32 0, %v385
      %v387 = vrot.slane %v375, %v386
      %v388 = vmul.f32 %v355, %v387
      %v389 = vmul.f32 %v358, %v387
      %v390 = vmul.f32 %v363, %v387
      %v391 = vmul.f32 %v366, %v387
      %v392 = vlaneseq
      %v393 = vshrl.u32 %v392, 7
      %v394 = vsub.s32 1, %v393
      %v395 = vrot.slane %v383, %v394
      %v396 = vadd.f32 %v388, %v395
      %v397 = vadd.f32 %v389, %v395
      %v398 = vadd.f32 %v390, %v395
      %v399 = vadd.f32 %v391, %v395
      %v400 = vmax.f32 %v396, 0.0
      %v401 = vmax.f32 %v397, 0.0
      %v402 = vmax.f32 %v398, 0.0
      %v403 = vmax.f32 %v399, 0.0
      %v404 = vpack.c.bf16 %v401, %v400
      %v405 = vpack.c.bf16 %v403, %v402
      %v406 = vld [vmem:[%s3] sm:$0xff]
      %v407 = vld [vmem:[%s3 + $0x8] sm:$0xff]
      %v408 = vld [vmem:[%s3 + $0x10] sm:$0xff]
      %v409 = vld [vmem:[%s3 + $0x18] sm:$0xff]
      %v410 = vld [vmem:[%s3 + $0x20] sm:$0xff]
      %v411 = vld [vmem:[%s3 + $0x28] sm:$0xff]
      %v412 = vld [vmem:[%s3 + $0x30] sm:$0xff]
      %v413 = vld [vmem:[%s3 + $0x38] sm:$0xff]
      %v414 = vpack.c.bf16 %v407, %v406
      %v415 = vpack.c.bf16 %v409, %v408
      %v416 = vpack.c.bf16 %v411, %v410
      %v417 = vpack.c.bf16 %v413, %v412
      %vm418 = vcmask 523264
      %v420 = vsel %vm418, %v404, 0
      %v423 = vsel %vm418, %v405, 0
      %v426 = vsel %vm418, %v414, 0
      %v429 = vsel %vm418, %v415, 0
      %v432 = vsel %vm418, %v416, 0
      %v435 = vsel %vm418, %v417, 0
      %437 = vmatprep.subr.bf16.mxu0 0
      %438 = vmatpush1.bf16.xpose.msra.mxu0 0
      %439 = vmatprep.subr.bf16.mxu0 0
      %440 = vmatpush1.bf16.xpose.msra.mxu0 0
      %441 = vmatprep.subr.bf16.mxu0 0
      %442 = vmatpush1.bf16.xpose.msra.mxu0 0
      %443 = vmatprep.subr.bf16.mxu0 0
      %444 = vmatpush1.bf16.xpose.msra.mxu0 0
      %445 = vmatprep.subr.bf16.mxu0 0
      %446 = vmatpush1.bf16.xpose.msra.mxu0 %v435
      %447 = vmatprep.subr.bf16.mxu0 0
      %448 = vmatpush1.bf16.xpose.msra.mxu0 %v432
      %449 = vmatprep.subr.bf16.mxu0 0
      %450 = vmatpush1.bf16.xpose.msra.mxu0 %v429
      %451 = vmatprep.subr.bf16.mxu0 0
      %452 = vmatpush1.bf16.xpose.msra.mxu0 %v426
      %453 = vmatprep.subr.bf16.mxu0 0
      %454 = vmatpush2.bf16.xpose.msra.mxu0 0
      %455 = vmatprep.subr.bf16.mxu0 0
      %456 = vmatpush2.bf16.xpose.msra.mxu0 0
      %457 = vmatprep.subr.bf16.mxu0 0
      %458 = vmatpush2.bf16.xpose.msra.mxu0 0
      %459 = vmatprep.subr.bf16.mxu0 0
      %460 = vmatpush2.bf16.xpose.msra.mxu0 0
      %461 = vmatprep.subr.bf16.mxu0 0
      %462 = vmatpush2.bf16.xpose.msra.mxu0 0
      %463 = vmatprep.subr.bf16.mxu0 0
      %464 = vmatpush2.bf16.xpose.msra.mxu0 0
      %465 = vmatprep.subr.bf16.mxu0 0
      %466 = vmatpush2.bf16.xpose.msra.mxu0 0
      %467 = vmatprep.subr.bf16.mxu0 0
      %468 = vmatpush2.bf16.xpose.msra.mxu0 0
      %469 = vmatprep.mubr.bf16.mxu0 0
      %470 = vmatmul.mubr.bf16.gmra.mxu0 %v420
      %v471 = vpop.f32.mrf.mxu0
      %v472 = vadd.f32 0.0, %v471
      %v473 = vpop.f32.mrf.mxu0
      %v474 = vpop.f32.mrf.mxu0
      %v475 = vadd.f32 0.0, %v474
      %v476 = vpop.f32.mrf.mxu0
      %477 = vmatprep.mubr.bf16.mxu0 0
      %478 = vmatmul.mubr.bf16.gmra.mxu0 %v423
      %v479 = vpop.f32.mrf.mxu0
      %v480 = vadd.f32 0.0, %v479
      %v481 = vpop.f32.mrf.mxu0
      %v482 = vpop.f32.mrf.mxu0
      %v483 = vadd.f32 0.0, %v482
      %v484 = vpop.f32.mrf.mxu0
      %485 = vdwg.mxu0
      %v486 = vld [vmem:[%s4] sm:$0xf]
      %v487 = vadd.f32 %v486, 1e-05
      %v488 = vrsqrt.pop %v487
      %v490 = vrot.slane %v488, 3
      %v492 = vmul.f32 %v486, %v490
      %v494 = vrot.slane %v492, 6
      %v496 = vmul.f32 %v486, %v494
      %v498 = vrot.slane %v496, 1
      %v500 = vsub.f32 %v486, %v498
      %v501 = vlaneseq
      %v502 = vshrl.u32 %v501, 7
      %v503 = vsub.s32 0, %v502
      %v504 = vrot.slane %v492, %v503
      %v505 = vmul.f32 %v472, %v504
      %v506 = vmul.f32 %v475, %v504
      %v507 = vmul.f32 %v480, %v504
      %v508 = vmul.f32 %v483, %v504
      %v509 = vlaneseq
      %v510 = vshrl.u32 %v509, 7
      %v511 = vsub.s32 1, %v510
      %v512 = vrot.slane %v500, %v511
      %v513 = vadd.f32 %v505, %v512
      %v514 = vadd.f32 %v506, %v512
      %v515 = vadd.f32 %v507, %v512
      %v516 = vadd.f32 %v508, %v512
      %v517 = vmax.f32 %v513, 0.0
      %v518 = vmax.f32 %v514, 0.0
      %v519 = vmax.f32 %v515, 0.0
      %v520 = vmax.f32 %v516, 0.0
      %v521 = vpack.c.bf16 %v518, %v517
      %v522 = vpack.c.bf16 %v520, %v519
      %v523 = vld [vmem:[%s5] sm:$0xff]
      %v524 = vld [vmem:[%s5 + $0x8] sm:$0xff]
      %v525 = vpack.c.bf16 %v524, %v523
      %v527 = vsel %vm418, %v521, 0
      %v530 = vsel %vm418, %v522, 0
      %v533 = vsel %vm418, %v525, 0
      %535 = vmatprep.subr.bf16.mxu0 0
      %536 = vmatpush1.bf16.xpose.msra.mxu0 0
      %537 = vmatprep.subr.bf16.mxu0 0
      %538 = vmatpush1.bf16.xpose.msra.mxu0 0
      %539 = vmatprep.subr.bf16.mxu0 0
      %540 = vmatpush1.bf16.xpose.msra.mxu0 0
      %541 = vmatprep.subr.bf16.mxu0 0
      %542 = vmatpush1.bf16.xpose.msra.mxu0 0
      %543 = vmatprep.subr.bf16.mxu0 0
      %544 = vmatpush1.bf16.xpose.msra.mxu0 0
      %545 = vmatprep.subr.bf16.mxu0 0
      %546 = vmatpush1.bf16.xpose.msra.mxu0 0
      %547 = vmatprep.subr.bf16.mxu0 0
      %548 = vmatpush1.bf16.xpose.msra.mxu0 0
      %549 = vmatprep.subr.bf16.mxu0 0
      %550 = vmatpush1.bf16.xpose.msra.mxu0 %v533
      %551 = vmatprep.subr.bf16.mxu0 0
      %552 = vmatpush2.bf16.xpose.msra.mxu0 0
      %553 = vmatprep.subr.bf16.mxu0 0
      %554 = vmatpush2.bf16.xpose.msra.mxu0 0
      %555 = vmatprep.subr.bf16.mxu0 0
      %556 = vmatpush2.bf16.xpose.msra.mxu0 0
      %557 = vmatprep.subr.bf16.mxu0 0
      %558 = vmatpush2.bf16.xpose.msra.mxu0 0
      %559 = vmatprep.subr.bf16.mxu0 0
      %560 = vmatpush2.bf16.xpose.msra.mxu0 0
      %561 = vmatprep.subr.bf16.mxu0 0
      %562 = vmatpush2.bf16.xpose.msra.mxu0 0
      %563 = vmatprep.subr.bf16.mxu0 0
      %564 = vmatpush2.bf16.xpose.msra.mxu0 0
      %565 = vmatprep.subr.bf16.mxu0 0
      %566 = vmatpush2.bf16.xpose.msra.mxu0 0
      %567 = vmatprep.mubr.bf16.mxu0 0
      %568 = vmatmul.mubr.bf16.gmra.mxu0 %v527
      %v569 = vpop.f32.mrf.mxu0
      %v570 = vadd.f32 0.0, %v569
      %v571 = vpop.f32.mrf.mxu0
      %v572 = vpop.f32.mrf.mxu0
      %v573 = vadd.f32 0.0, %v572
      %v574 = vpop.f32.mrf.mxu0
      %575 = vmatprep.mubr.bf16.mxu0 0
      %576 = vmatmul.mubr.bf16.gmra.mxu0 %v530
      %v577 = vpop.f32.mrf.mxu0
      %v578 = vadd.f32 0.0, %v577
      %v579 = vpop.f32.mrf.mxu0
      %v580 = vpop.f32.mrf.mxu0
      %v581 = vadd.f32 0.0, %v580
      %v582 = vpop.f32.mrf.mxu0
      %583 = vdwg.mxu0
      %v584 = vld [vmem:[%s6] sm:$0xf]
      %v585 = vadd.f32 %v584, 1e-05
      %v586 = vrsqrt.pop %v585
      %v588 = vrot.slane %v586, 3
      %v590 = vmul.f32 %v584, %v588
      %v592 = vrot.slane %v590, 6
      %v594 = vmul.f32 %v584, %v592
      %v596 = vrot.slane %v594, 1
      %v598 = vsub.f32 %v584, %v596
      %v599 = vlaneseq
      %v600 = vshrl.u32 %v599, 7
      %v601 = vsub.s32 0, %v600
      %v602 = vrot.slane %v590, %v601
      %v603 = vmul.f32 %v570, %v602
      %v604 = vmul.f32 %v573, %v602
      %v605 = vmul.f32 %v578, %v602
      %v606 = vmul.f32 %v581, %v602
      %v607 = vlaneseq
      %v608 = vshrl.u32 %v607, 7
      %v609 = vsub.s32 1, %v608
      %v610 = vrot.slane %v598, %v609
      %v611 = vadd.f32 %v603, %v610
      %v612 = vadd.f32 %v604, %v610
      %v613 = vadd.f32 %v605, %v610
      %v614 = vadd.f32 %v606, %v610
      %vm615 = vcmask 130048
      %616 = vst.msk [vmem:[%s280] sm:$0xff] %vm615, %v611
      %617 = vst.msk [vmem:[%s280 + $0x8] sm:$0xff] %vm615, %v612
      %618 = vst.msk [vmem:[%s280 + $0x10] sm:$0xff] %vm615, %v613
      %619 = vst.msk [vmem:[%s280 + $0x18] sm:$0xff] %vm615, %v614
      %s620 = smul.u32 4, %s18
      %p621 = scmp.lt.s32.totalorder %s620, 7
      %s622 = scalar_select %p621, %s620, 7
      %s623 = smul.addr %s622, 8
      %s624 = scalar_lea.vmem %s7, %s623
      // Predicated region
      $region49: #{tpu_custom_call.1} parent=47 // pred_check
        %p625 = pneg %p188
      $region50: #{tpu_custom_call.1} parent=47 // pred_check_branch
        %627 = sbr.rel (%p625) target = $region52
      $region51: #{tpu_custom_call.1} parent=47 // pred_region
        %s628 = smul.u32 4, %s18
      $region52: #{tpu_custom_call.1} parent=47 // pred_fallthru
        _
    $region48: #{tpu_custom_call.1} parent=5 // pred_fallthru
      _
    %p629 = scmp.le.s32.totalorder 2, %s13
    // Predicated region
    $region53: #{tpu_custom_call.1} parent=5 // pred_check
      %p630 = pneg %p629
    $region54: #{tpu_custom_call.1} parent=5 // pred_check_branch
      %632 = sbr.rel (%p630) target = $region56
    $region55: #{tpu_custom_call.1} parent=5 // pred_region
      %s633 = ssub.s32 %s13, 2
      // Predicated region
      $region57: #{tpu_custom_call.1} parent=55 // pred_check
        %p634 = pneg %p194
      $region58: #{tpu_custom_call.1} parent=55 // pred_check_branch
        %636 = sbr.rel (%p634) target = $region60
      $region59: #{tpu_custom_call.1} parent=55 // pred_region
        %s637 = smul.u32 4, %s19
        %p638 = scmp.lt.s32.totalorder %s637, 7
        %s639 = scalar_select %p638, %s637, 7
        %s640 = smul.addr %s639, 8
        %s641 = scalar_lea.vmem %s7, %s640
      $region60: #{tpu_custom_call.1} parent=55 // pred_fallthru
        _
    $region56: #{tpu_custom_call.1} parent=5 // pred_fallthru
      _
  $region6: #{tpu_custom_call.1} parent=0 // loop_footer
    %s17 = sadd.s32 1, %s13
  $region7: #{tpu_custom_call.1} parent=0 // loop_footer_branch
    %12 = sbr.rel target = $region3
  $region8: #{tpu_custom_call.1} parent=0 // loop_exit
    _

</llo_original>
